<compile_context>
chip_gen: v7x
topology: tpu7x:2x2x1
jax: 0.10.0
libtpu: 0.0.40
codegen_flags: <defaults>
</compile_context>

<pallas_src>
import functools

import jax
import jax.numpy as jnp
from jax.experimental import pallas as pl
from jax.experimental.pallas import tpu as pltpu


def _round_up(x: int, m: int) -> int:
    return ((x + m - 1) // m) * m


def _default_vmem_limit() -> int:
    """Generation-aware VMEM budget: ~75% of physical, capped at 100 MiB."""
    try:
        cap = pltpu.get_tpu_info().vmem_capacity_bytes
    except Exception:
        cap = 64 * 1024 * 1024            # conservative (v7x physical VMEM)
    return min(100 * 1024 * 1024, int(cap) * 3 // 4)


_VMEM_LIMIT = _default_vmem_limit()


def with_adapter_kernel(x_ref, wb_ref, bb_ref, a_ref, b_ref, o_ref, low_ref,
                        *, gate_lora_on_j0):
    """Grid = (M/tm, O/tn, H/tk); k (reduction over hidden) is innermost."""
    j = pl.program_id(1)
    k = pl.program_id(2)
    nk = pl.num_programs(2)

    @pl.when(k == 0)
    def _init():
        # Fold the bias straight into the resident f32 output block.
        o_ref[...] = jnp.broadcast_to(bb_ref[...], o_ref.shape)

    x = x_ref[...]                                                 # [tm, tk] bf16
    # Base partial: accumulate directly into the VMEM-resident f32 output.
    o_ref[...] += jnp.dot(x, wb_ref[...], preferred_element_type=jnp.float32)

    def _lora_down():
        @pl.when(k == 0)
        def _():
            low_ref[...] = jnp.zeros_like(low_ref)
        # adapter "down" partial: [tm, tk] @ [tk, R] -> f32 (stays in VMEM).
        low_ref[...] += jnp.dot(x, a_ref[...],
                                preferred_element_type=jnp.float32)

    if gate_lora_on_j0:
        # x @ A does not depend on j: compute it once per i block (j == 0) and
        # reuse the persistent low_ref scratch for all other j blocks.
        pl.when(j == 0)(_lora_down)
    else:
        _lora_down()

    @pl.when(k == nk - 1)
    def _finalize():
        # adapter "up": [tm, R] @ [R, tn] in f32 (tiny; preserves the
        # accumulated low-rank precision instead of truncating to bf16).
        o_ref[...] += jnp.dot(low_ref[...], b_ref[...],
                              preferred_element_type=jnp.float32)


def pack_with_adapter_weights(w_base, b_base, w_a, w_b, *, tn=512, tk=1024):
    """One-time weight packing (pad + cast). Keep OFF the per-call hot path."""
    H, O = w_base.shape
    R = w_a.shape[1]
    b_base = jnp.asarray(b_base).reshape(1, O)

    tn = min(tn, _round_up(O, 128))   # lane-dense (unmasked) output stores
    tk = min(tk, _round_up(H, 128))
    Hp, Op = _round_up(H, tk), _round_up(O, tn)

    cdt = jnp.bfloat16                # MXU operand dtype; f32 accumulation
    wbp = jnp.zeros((Hp, Op), cdt).at[:H, :O].set(w_base.astype(cdt))
    bbp = jnp.zeros((1, Op), jnp.float32).at[:, :O].set(
        b_base.astype(jnp.float32))
    wap = jnp.zeros((Hp, R), cdt).at[:H, :].set(w_a.astype(cdt))
    # B stays f32: tiny (R x O) and keeps the up-projection in full precision.
    wbp2 = jnp.zeros((R, Op), jnp.float32).at[:, :O].set(
        w_b.astype(jnp.float32))

    meta = dict(out_features=O, tn=tn, tk=tk)
    return wbp, bbp, wap, wbp2, meta


@functools.partial(jax.jit, static_argnames=("out_features", "tm", "tn", "tk"))
def with_adapter_packed(x, w_base_p, bias_p, w_a_p, w_b_p, *,
                        out_features, tn, tk, tm=512):
    """x: [M, H]; packed weights from pack_with_adapter_weights()."""
    M, H = x.shape
    Hp, Op = w_base_p.shape
    R = w_a_p.shape[1]

    tm = min(tm, _round_up(M, 8))
    Mp = _round_up(M, tm)

    # Fast path: skip activation padding when already tile-aligned.
    if M == Mp and H == Hp:
        xp = x.astype(jnp.bfloat16)
    else:
        xp = jnp.zeros((Mp, Hp), jnp.bfloat16).at[:M, :H].set(
            x.astype(jnp.bfloat16))

    ni, nj, nk = Mp // tm, Op // tn, Hp // tk
    grid = (ni, nj, nk)

    # Megacore strategy: if i has >= 2 blocks, shard i ("parallel") and gate
    # the LoRA down-projection on j == 0 (j must then be "arbitrary" so the
    # carried low_ref is legal).  Otherwise keep per-j recompute and shard j.
    gate_lora_on_j0 = ni >= 2
    if gate_lora_on_j0:
        dim_sem = ("parallel", "arbitrary", "arbitrary")
    else:
        dim_sem = ("arbitrary", "parallel", "arbitrary")

    out = pl.pallas_call(
        functools.partial(with_adapter_kernel,
                          gate_lora_on_j0=gate_lora_on_j0),
        out_shape=jax.ShapeDtypeStruct((Mp, Op), jnp.float32),
        grid_spec=pltpu.PrefetchScalarGridSpec(
            num_scalar_prefetch=0,
            grid=grid,
            in_specs=[
                pl.BlockSpec((tm, tk), lambda i, j, k: (i, k)),   # x
                pl.BlockSpec((tk, tn), lambda i, j, k: (k, j)),   # W_base
                pl.BlockSpec((1, tn), lambda i, j, k: (0, j)),    # bias
                pl.BlockSpec((tk, R), lambda i, j, k: (k, 0)),    # A (down)
                pl.BlockSpec((R, tn), lambda i, j, k: (0, j)),    # B (up, f32)
            ],
            out_specs=pl.BlockSpec((tm, tn), lambda i, j, k: (i, j)),
            scratch_shapes=[
                pltpu.VMEM((tm, R), jnp.float32),   # low-rank accumulator
            ],
        ),
        compiler_params=pltpu.CompilerParams(
            dimension_semantics=dim_sem,
            vmem_limit_bytes=_VMEM_LIMIT,
        ),
    )(xp, w_base_p, bias_p, w_a_p, w_b_p)

    if M == Mp and out_features == Op:
        return out
    return out[:M, :out_features]


if __name__ == "__main__":
    batch, seq, hidden, out, rank = 2, 8, 32, 32, 8

    key = jax.random.PRNGKey(0)
    k_x, k_wb, k_bb, k_a, k_b = jax.random.split(key, 5)

    x = jax.random.normal(k_x, (batch, seq, hidden), dtype=jnp.float32)
    w_base = jax.random.normal(k_wb, (hidden, out), dtype=jnp.float32) * 0.05
    b_base = jax.random.normal(k_bb, (1, out), dtype=jnp.float32) * 0.05
    w_a = jax.random.normal(k_a, (hidden, rank), dtype=jnp.float32) * 0.05
    w_b = jax.random.normal(k_b, (rank, out), dtype=jnp.float32) * 0.05

    x2d = x.reshape(batch * seq, hidden)

    # One-time weight packing (off the hot path), then the jitted fused call.
    wbp, bbp, wap, wbp2, meta = pack_with_adapter_weights(w_base, b_base,
                                                          w_a, w_b)
    y = with_adapter_packed(x2d, wbp, bbp, wap, wbp2, **meta)
    y = jax.block_until_ready(y)

    # pure-JAX (f32) reference for WithAdapter.forward
    ref = (x2d @ w_base + b_base) + (x2d @ w_a) @ w_b
    # bf16 MXU operands (f32 accumulation) -> loosened tolerance vs f32 ref.
    assert jnp.allclose(y, ref, atol=2e-2, rtol=2e-2), "mismatch vs reference"

    y = y.reshape(batch, seq, out)  # restore [batch, seq, out]
    print("KERNEL_OK")
</pallas_src>

<mosaic_0001>
module attributes {stable_mosaic.version = 11 : i64} {
  func.func @with_adapter_kernel(%arg0: i32, %arg1: i32, %arg2: i32, %arg3: memref<16x128xbf16, #tpu.memory_space<vmem>>, %arg4: memref<128x128xbf16, #tpu.memory_space<vmem>>, %arg5: memref<1x128xf32, #tpu.memory_space<vmem>>, %arg6: memref<128x8xbf16, #tpu.memory_space<vmem>>, %arg7: memref<8x128xf32, #tpu.memory_space<vmem>>, %arg8: memref<16x128xf32, #tpu.memory_space<vmem>>, %arg9: memref<16x8xf32, #tpu.memory_space<vmem>>) attributes {dimension_semantics = [#tpu.dimension_semantics<arbitrary>, #tpu.dimension_semantics<parallel>, #tpu.dimension_semantics<arbitrary>], iteration_bounds = array<i64: 1, 1, 1>, scalar_prefetch = 0 : i64, scratch_operands = 1 : i64, tpu.core_type = #tpu.core_type<tc>, window_params = [{transform_indices = @transform_0, window_bounds = array<i64: 16, 128>}, {transform_indices = @transform_1, window_bounds = array<i64: 128, 128>}, {transform_indices = @transform_2, window_bounds = array<i64: 1, 128>}, {transform_indices = @transform_3, window_bounds = array<i64: 128, 8>}, {transform_indices = @transform_4, window_bounds = array<i64: 8, 128>}, {transform_indices = @transform_5, window_bounds = array<i64: 16, 128>}]} {
    %c0_i32 = arith.constant 0 : i32
    %0 = arith.cmpi eq, %arg2, %c0_i32 : i32
    %1 = arith.extui %0 : i1 to i32
    %c0_i32_0 = arith.constant 0 : i32
    %2 = arith.cmpi ne, %1, %c0_i32_0 : i32
    scf.if %2 {
      %c0_19 = arith.constant 0 : index
      %c0_20 = arith.constant 0 : index
      %20 = vector.load %arg5[%c0_19, %c0_20] : memref<1x128xf32, #tpu.memory_space<vmem>>, vector<1x128xf32>
      %21 = vector.shape_cast %20 : vector<1x128xf32> to vector<1x128xf32>
      %22 = vector.broadcast %21 : vector<1x128xf32> to vector<16x128xf32>
      %c0_21 = arith.constant 0 : index
      %c0_22 = arith.constant 0 : index
      %23 = vector.load %arg8[%c0_21, %c0_22] : memref<16x128xf32, #tpu.memory_space<vmem>>, vector<16x128xf32>
      tpu.vector_store %arg8[%c0_21, %c0_22], %22 {strides = array<i32>} : memref<16x128xf32, #tpu.memory_space<vmem>>, vector<16x128xf32>,
    } else {
    }
    %c0 = arith.constant 0 : index
    %c0_1 = arith.constant 0 : index
    %3 = vector.load %arg3[%c0, %c0_1] : memref<16x128xbf16, #tpu.memory_space<vmem>>, vector<16x128xbf16>
    %c0_2 = arith.constant 0 : index
    %c0_3 = arith.constant 0 : index
    %4 = vector.load %arg8[%c0_2, %c0_3] : memref<16x128xf32, #tpu.memory_space<vmem>>, vector<16x128xf32>
    %c0_4 = arith.constant 0 : index
    %c0_5 = arith.constant 0 : index
    %5 = vector.load %arg4[%c0_4, %c0_5] : memref<128x128xbf16, #tpu.memory_space<vmem>>, vector<128x128xbf16>
    %cst = arith.constant dense<0.000000e+00> : vector<16x128xf32>
    %6 = tpu.matmul %3, %5, %cst {dimension_numbers = #tpu.dot_dimension_numbers<[1], [0], [0], [1], [0, 0, 1, 1], [], []>} : vector<16x128xbf16>, vector<128x128xbf16>, vector<16x128xf32> -> vector<16x128xf32>
    %7 = arith.addf %4, %6 : vector<16x128xf32>
    %c0_6 = arith.constant 0 : index
    %c0_7 = arith.constant 0 : index
    %8 = vector.load %arg8[%c0_6, %c0_7] : memref<16x128xf32, #tpu.memory_space<vmem>>, vector<16x128xf32>
    tpu.vector_store %arg8[%c0_6, %c0_7], %7 {strides = array<i32>} : memref<16x128xf32, #tpu.memory_space<vmem>>, vector<16x128xf32>,
    %c0_i32_8 = arith.constant 0 : i32
    %9 = arith.cmpi eq, %arg2, %c0_i32_8 : i32
    %10 = arith.extui %9 : i1 to i32
    %c0_i32_9 = arith.constant 0 : i32
    %11 = arith.cmpi ne, %10, %c0_i32_9 : i32
    scf.if %11 {
      %cst_19 = arith.constant 0.000000e+00 : f32
      %20 = vector.broadcast %cst_19 : f32 to vector<16x8xf32>
      %c0_20 = arith.constant 0 : index
      %c0_21 = arith.constant 0 : index
      %21 = vector.load %arg9[%c0_20, %c0_21] : memref<16x8xf32, #tpu.memory_space<vmem>>, vector<16x8xf32>
      tpu.vector_store %arg9[%c0_20, %c0_21], %20 {strides = array<i32>} : memref<16x8xf32, #tpu.memory_space<vmem>>, vector<16x8xf32>,
    } else {
    }
    %c0_10 = arith.constant 0 : index
    %c0_11 = arith.constant 0 : index
    %12 = vector.load %arg9[%c0_10, %c0_11] : memref<16x8xf32, #tpu.memory_space<vmem>>, vector<16x8xf32>
    %c0_12 = arith.constant 0 : index
    %c0_13 = arith.constant 0 : index
    %13 = vector.load %arg6[%c0_12, %c0_13] : memref<128x8xbf16, #tpu.memory_space<vmem>>, vector<128x8xbf16>
    %cst_14 = arith.constant dense<0.000000e+00> : vector<16x8xf32>
    %14 = tpu.matmul %3, %13, %cst_14 {dimension_numbers = #tpu.dot_dimension_numbers<[1], [0], [0], [1], [0, 0, 1, 1], [], []>} : vector<16x128xbf16>, vector<128x8xbf16>, vector<16x8xf32> -> vector<16x8xf32>
    %15 = arith.addf %12, %14 : vector<16x8xf32>
    %c0_15 = arith.constant 0 : index
    %c0_16 = arith.constant 0 : index
    %16 = vector.load %arg9[%c0_15, %c0_16] : memref<16x8xf32, #tpu.memory_space<vmem>>, vector<16x8xf32>
    tpu.vector_store %arg9[%c0_15, %c0_16], %15 {strides = array<i32>} : memref<16x8xf32, #tpu.memory_space<vmem>>, vector<16x8xf32>,
    %c0_i32_17 = arith.constant 0 : i32
    %17 = arith.cmpi eq, %arg2, %c0_i32_17 : i32
    %18 = arith.extui %17 : i1 to i32
    %c0_i32_18 = arith.constant 0 : i32
    %19 = arith.cmpi ne, %18, %c0_i32_18 : i32
    scf.if %19 {
      %c0_19 = arith.constant 0 : index
      %c0_20 = arith.constant 0 : index
      %20 = vector.load %arg8[%c0_19, %c0_20] : memref<16x128xf32, #tpu.memory_space<vmem>>, vector<16x128xf32>
      %c0_21 = arith.constant 0 : index
      %c0_22 = arith.constant 0 : index
      %21 = vector.load %arg9[%c0_21, %c0_22] : memref<16x8xf32, #tpu.memory_space<vmem>>, vector<16x8xf32>
      %c0_23 = arith.constant 0 : index
      %c0_24 = arith.constant 0 : index
      %22 = vector.load %arg7[%c0_23, %c0_24] : memref<8x128xf32, #tpu.memory_space<vmem>>, vector<8x128xf32>
      %cst_25 = arith.constant dense<0.000000e+00> : vector<16x128xf32>
      %23 = tpu.matmul %21, %22, %cst_25 {dimension_numbers = #tpu.dot_dimension_numbers<[1], [0], [0], [1], [0, 0, 1, 1], [], []>} : vector<16x8xf32>, vector<8x128xf32>, vector<16x128xf32> -> vector<16x128xf32>
      %24 = arith.addf %20, %23 : vector<16x128xf32>
      %c0_26 = arith.constant 0 : index
      %c0_27 = arith.constant 0 : index
      %25 = vector.load %arg8[%c0_26, %c0_27] : memref<16x128xf32, #tpu.memory_space<vmem>>, vector<16x128xf32>
      tpu.vector_store %arg8[%c0_26, %c0_27], %24 {strides = array<i32>} : memref<16x128xf32, #tpu.memory_space<vmem>>, vector<16x128xf32>,
    } else {
    }
    return
  }
  func.func @transform_0(%arg0: i32, %arg1: i32, %arg2: i32) -> (i32, i32) {
    %c0_i32 = arith.constant 0 : i32
    return %arg0, %arg2 : i32, i32
  }
  func.func @transform_1(%arg0: i32, %arg1: i32, %arg2: i32) -> (i32, i32) {
    %c0_i32 = arith.constant 0 : i32
    return %arg2, %arg1 : i32, i32
  }
  func.func @transform_2(%arg0: i32, %arg1: i32, %arg2: i32) -> (i32, i32) {
    %c0_i32 = arith.constant 0 : i32
    %c0_i32_0 = arith.constant 0 : i32
    return %c0_i32, %arg1 : i32, i32
  }
  func.func @transform_3(%arg0: i32, %arg1: i32, %arg2: i32) -> (i32, i32) {
    %c0_i32 = arith.constant 0 : i32
    %c0_i32_0 = arith.constant 0 : i32
    return %arg2, %c0_i32 : i32, i32
  }
  func.func @transform_4(%arg0: i32, %arg1: i32, %arg2: i32) -> (i32, i32) {
    %c0_i32 = arith.constant 0 : i32
    %c0_i32_0 = arith.constant 0 : i32
    return %c0_i32, %arg1 : i32, i32
  }
  func.func @transform_5(%arg0: i32, %arg1: i32, %arg2: i32) -> (i32, i32) {
    %c0_i32 = arith.constant 0 : i32
    return %arg0, %arg1 : i32, i32
  }
}

</mosaic_0001>

<llo_original>
// kernel: with_adapter_packed.1
$region0: #{with_adapter_packed.1}
  #allocation0 [shape = 'u32[]', space=smem, size = 0x4, offset = 0x4, fixed_abs, tag = 'smem constant byte address 0x4 - core index']
  #allocation1 [shape = 'u32[144,128]{1,0:T(1,128)}', space=vmem, size = 0x12000, scoped, tag = 'internal scratch']
  #allocation2 [shape = 'f32[16,8]{1,0:T(8,128)}', space=vmem, size = 0x2000, scoped, tag = 'scratch operand']
  %s0 = inlined_call_operand.vmem [shape: bf16[16,128], index: 0, kind: input, shape index: {}]
  %s1 = inlined_call_operand.vmem [shape: bf16[128,128], index: 1, kind: input, shape index: {}]
  %s2 = inlined_call_operand.vmem [shape: f32[1,128], index: 2, kind: input, shape index: {}]
  %s3 = inlined_call_operand.vmem [shape: bf16[128,8], index: 3, kind: input, shape index: {}]
  %s4 = inlined_call_operand.vmem [shape: f32[8,128], index: 4, kind: input, shape index: {}]
  %s5 = inlined_call_operand.hbm [shape: f32[16,128], index: 5, kind: output, shape index: {}]
  %s6 = sld [smem:[#allocation0]]
  $region42: #{with_adapter_packed.1} parent=0
    _
  %s8 = ssub.s32 1, %s6
  %s9 = scalar_select 0, %s8, %s6
  $region1: #{with_adapter_packed.1} parent=0
    #allocation3 [shape = 'u8[8192]{0}', space=vmem, size = 0x2000, scoped, tag = 'output window, operand 0, single buffered']
    #allocation4 [shape = 's32[1]{0}', space=sflag, size = 0x4, scoped, tag = 'scoped memory for with_adapter_packed.1']
    %10 = vsyncpa [#allocation4], 0
    // Predicated region
    $region2: #{with_adapter_packed.1} parent=1 // pred_check
      _
    $region3: #{with_adapter_packed.1} parent=1 // pred_check_branch
      %12 = sbr.rel (0) target = $region5
    $region4: #{with_adapter_packed.1} parent=1 // pred_region
      _
    $region5: #{with_adapter_packed.1} parent=1 // pred_fallthru
      _
    // Predicated region
    $region6: #{with_adapter_packed.1} parent=1 // pred_check
      _
    $region7: #{with_adapter_packed.1} parent=1 // pred_check_branch
      %14 = sbr.rel (0) target = $region9
    $region8: #{with_adapter_packed.1} parent=1 // pred_region
      _
    $region9: #{with_adapter_packed.1} parent=1 // pred_fallthru
      _
    // Predicated region
    $region10: #{with_adapter_packed.1} parent=1 // pred_check
      _
    $region11: #{with_adapter_packed.1} parent=1 // pred_check_branch
      %16 = sbr.rel (0) target = $region13
    $region12: #{with_adapter_packed.1} parent=1 // pred_region
      _
    $region13: #{with_adapter_packed.1} parent=1 // pred_fallthru
      _
    // Predicated region
    $region14: #{with_adapter_packed.1} parent=1 // pred_check
      _
    $region15: #{with_adapter_packed.1} parent=1 // pred_check_branch
      %18 = sbr.rel (0) target = $region17
    $region16: #{with_adapter_packed.1} parent=1 // pred_region
      _
    $region17: #{with_adapter_packed.1} parent=1 // pred_fallthru
      _
    // Predicated region
    $region18: #{with_adapter_packed.1} parent=1 // pred_check
      _
    $region19: #{with_adapter_packed.1} parent=1 // pred_check_branch
      %20 = sbr.rel (0) target = $region21
    $region20: #{with_adapter_packed.1} parent=1 // pred_region
      _
    $region21: #{with_adapter_packed.1} parent=1 // pred_fallthru
      _
    %p22 = scmp.eq.s32.totalorder 0, 0
    // Predicated region
    $region22: #{with_adapter_packed.1} parent=1 // pred_check
      %p23 = pneg %p22
    $region23: #{with_adapter_packed.1} parent=1 // pred_check_branch
      %25 = sbr.rel (%p23) target = $region25
    $region24: #{with_adapter_packed.1} parent=1 // pred_region
      %v26 = vld [vmem:[%s2] sm:$0x1]
      %v28 = vlaneseq
      %v29 = vshrl.u32 %v28, 7
      %v30 = vsub.s32 0, %v29
      %v31 = vrot.slane %v26, %v30
      %33 = vst [vmem:[#allocation3] sm:$0xff] %v31
      %34 = vst [vmem:[#allocation3 + $0x8] sm:$0xff] %v31
    $region25: #{with_adapter_packed.1} parent=1 // pred_fallthru
      _
    %v35 = vld [vmem:[%s0] sm:$0xf]
    %v36 = vld [vmem:[%s0 + $0x4] sm:$0xf]
    %v37 = vld [vmem:[#allocation3] sm:$0xff]
    %v38 = vld [vmem:[#allocation3 + $0x8] sm:$0xff]
    %v39 = vld [vmem:[%s1] sm:$0xf]
    %v40 = vld [vmem:[%s1 + $0x4] sm:$0xf]
    %v41 = vld [vmem:[%s1 + $0x8] sm:$0xf]
    %v42 = vld [vmem:[%s1 + $0xc] sm:$0xf]
    %v43 = vld [vmem:[%s1 + $0x10] sm:$0xf]
    %v44 = vld [vmem:[%s1 + $0x14] sm:$0xf]
    %v45 = vld [vmem:[%s1 + $0x18] sm:$0xf]
    %v46 = vld [vmem:[%s1 + $0x1c] sm:$0xf]
    %v47 = vld [vmem:[%s1 + $0x20] sm:$0xf]
    %v48 = vld [vmem:[%s1 + $0x24] sm:$0xf]
    %v49 = vld [vmem:[%s1 + $0x28] sm:$0xf]
    %v50 = vld [vmem:[%s1 + $0x2c] sm:$0xf]
    %v51 = vld [vmem:[%s1 + $0x30] sm:$0xf]
    %v52 = vld [vmem:[%s1 + $0x34] sm:$0xf]
    %v53 = vld [vmem:[%s1 + $0x38] sm:$0xf]
    %v54 = vld [vmem:[%s1 + $0x3c] sm:$0xf]
    %v57 = vunpack.c.l.b16 %v35
    %v58 = vunpack.c.l.b16 %v36
    %v59 = vpack.c.b16 %v58, %v57
    %v77 = vunpack.c.l.b16 %v39
    %v78 = vunpack.c.l.b16 %v40
    %v79 = vunpack.c.l.b16 %v41
    %v80 = vunpack.c.l.b16 %v42
    %v81 = vunpack.c.l.b16 %v43
    %v82 = vunpack.c.l.b16 %v44
    %v83 = vunpack.c.l.b16 %v45
    %v84 = vunpack.c.l.b16 %v46
    %v85 = vunpack.c.l.b16 %v47
    %v86 = vunpack.c.l.b16 %v48
    %v87 = vunpack.c.l.b16 %v49
    %v88 = vunpack.c.l.b16 %v50
    %v89 = vunpack.c.l.b16 %v51
    %v90 = vunpack.c.l.b16 %v52
    %v91 = vunpack.c.l.b16 %v53
    %v92 = vunpack.c.l.b16 %v54
    %v93 = vpack.c.b16 %v78, %v77
    %v94 = vpack.c.b16 %v80, %v79
    %v95 = vpack.c.b16 %v82, %v81
    %v96 = vpack.c.b16 %v84, %v83
    %v97 = vpack.c.b16 %v86, %v85
    %v98 = vpack.c.b16 %v88, %v87
    %v99 = vpack.c.b16 %v90, %v89
    %v100 = vpack.c.b16 %v92, %v91
    %109 = vmatprep.subr.bf16.mxu0 0
    %110 = vmatpush1.bf16.msra.mxu0 %v93
    %111 = vmatprep.subr.bf16.mxu0 0
    %112 = vmatpush1.bf16.msra.mxu0 %v94
    %113 = vmatprep.subr.bf16.mxu0 0
    %114 = vmatpush1.bf16.msra.mxu0 %v95
    %115 = vmatprep.subr.bf16.mxu0 0
    %116 = vmatpush1.bf16.msra.mxu0 %v96
    %117 = vmatprep.subr.bf16.mxu0 0
    %118 = vmatpush1.bf16.msra.mxu0 %v97
    %119 = vmatprep.subr.bf16.mxu0 0
    %120 = vmatpush1.bf16.msra.mxu0 %v98
    %121 = vmatprep.subr.bf16.mxu0 0
    %122 = vmatpush1.bf16.msra.mxu0 %v99
    %123 = vmatprep.subr.bf16.mxu0 0
    %124 = vmatpush1.bf16.msra.mxu0 %v100
    %125 = vmatprep.subr.bf16.mxu0 0
    %126 = vmatpush1.bf16.msra.mxu0 0
    %127 = vmatprep.subr.bf16.mxu0 0
    %128 = vmatpush1.bf16.msra.mxu0 0
    %129 = vmatprep.subr.bf16.mxu0 0
    %130 = vmatpush1.bf16.msra.mxu0 0
    %131 = vmatprep.subr.bf16.mxu0 0
    %132 = vmatpush1.bf16.msra.mxu0 0
    %133 = vmatprep.subr.bf16.mxu0 0
    %134 = vmatpush1.bf16.msra.mxu0 0
    %135 = vmatprep.subr.bf16.mxu0 0
    %136 = vmatpush1.bf16.msra.mxu0 0
    %137 = vmatprep.subr.bf16.mxu0 0
    %138 = vmatpush1.bf16.msra.mxu0 0
    %139 = vmatprep.subr.bf16.mxu0 0
    %140 = vmatpush1.bf16.msra.mxu0 0
    %141 = vmatprep.mubr.bf16.mxu0 0
    %142 = vmatmul.mubr.bf16.gmra.mrb[0].mxu0 %v59
    %v143 = vpop.f32.mrb[0].mxu0
    %v144 = vadd.f32 0.0, %v143
    %v145 = vpop.f32.mrb[0].mxu0
    %v146 = vpop.f32.mrb[0].mxu0
    %v147 = vadd.f32 0.0, %v146
    %v148 = vpop.f32.mrb[0].mxu0
    %149 = vdwg.mxu0
    %v150 = vadd.f32 %v37, %v144
    %v151 = vadd.f32 %v38, %v147
    %152 = vst [vmem:[#allocation3] sm:$0xff] %v150
    %153 = vst [vmem:[#allocation3 + $0x8] sm:$0xff] %v151
    // Predicated region
    $region26: #{with_adapter_packed.1} parent=1 // pred_check
      %p154 = pneg %p22
    $region27: #{with_adapter_packed.1} parent=1 // pred_check_branch
      %156 = sbr.rel (%p154) target = $region29
    $region28: #{with_adapter_packed.1} parent=1 // pred_region
      %vm157 = vcmask 64512
      %158 = vst.msk [vmem:[#allocation2] sm:$0xff] %vm157, 0.0
      %159 = vst.msk [vmem:[#allocation2 + $0x8] sm:$0xff] %vm157, 0.0
    $region29: #{with_adapter_packed.1} parent=1 // pred_fallthru
      _
    %v160 = vld [vmem:[#allocation2] sm:$0xff]
    %v161 = vld [vmem:[#allocation2 + $0x8] sm:$0xff]
    %v162 = vld [vmem:[%s3] sm:$0xf]
    %v163 = vld [vmem:[%s3 + $0x4] sm:$0xf]
    %v164 = vld [vmem:[%s3 + $0x8] sm:$0xf]
    %v165 = vld [vmem:[%s3 + $0xc] sm:$0xf]
    %v166 = vld [vmem:[%s3 + $0x10] sm:$0xf]
    %v167 = vld [vmem:[%s3 + $0x14] sm:$0xf]
    %v168 = vld [vmem:[%s3 + $0x18] sm:$0xf]
    %v169 = vld [vmem:[%s3 + $0x1c] sm:$0xf]
    %v170 = vld [vmem:[%s3 + $0x20] sm:$0xf]
    %v171 = vld [vmem:[%s3 + $0x24] sm:$0xf]
    %v172 = vld [vmem:[%s3 + $0x28] sm:$0xf]
    %v173 = vld [vmem:[%s3 + $0x2c] sm:$0xf]
    %v174 = vld [vmem:[%s3 + $0x30] sm:$0xf]
    %v175 = vld [vmem:[%s3 + $0x34] sm:$0xf]
    %v176 = vld [vmem:[%s3 + $0x38] sm:$0xf]
    %v177 = vld [vmem:[%s3 + $0x3c] sm:$0xf]
    %v194 = vunpack.c.l.b16 %v162
    %v195 = vunpack.c.l.b16 %v163
    %v196 = vunpack.c.l.b16 %v164
    %v197 = vunpack.c.l.b16 %v165
    %v198 = vunpack.c.l.b16 %v166
    %v199 = vunpack.c.l.b16 %v167
    %v200 = vunpack.c.l.b16 %v168
    %v201 = vunpack.c.l.b16 %v169
    %v202 = vunpack.c.l.b16 %v170
    %v203 = vunpack.c.l.b16 %v171
    %v204 = vunpack.c.l.b16 %v172
    %v205 = vunpack.c.l.b16 %v173
    %v206 = vunpack.c.l.b16 %v174
    %v207 = vunpack.c.l.b16 %v175
    %v208 = vunpack.c.l.b16 %v176
    %v209 = vunpack.c.l.b16 %v177
    %v210 = vpack.c.b16 %v195, %v194
    %v211 = vpack.c.b16 %v197, %v196
    %v212 = vpack.c.b16 %v199, %v198
    %v213 = vpack.c.b16 %v201, %v200
    %v214 = vpack.c.b16 %v203, %v202
    %v215 = vpack.c.b16 %v205, %v204
    %v216 = vpack.c.b16 %v207, %v206
    %v217 = vpack.c.b16 %v209, %v208
    %226 = vmatprep.subr.bf16.mxu0 0
    %227 = vmatpush1.bf16.msra.mxu0 %v210
    %228 = vmatprep.subr.bf16.mxu0 0
    %229 = vmatpush1.bf16.msra.mxu0 %v211
    %230 = vmatprep.subr.bf16.mxu0 0
    %231 = vmatpush1.bf16.msra.mxu0 %v212
    %232 = vmatprep.subr.bf16.mxu0 0
    %233 = vmatpush1.bf16.msra.mxu0 %v213
    %234 = vmatprep.subr.bf16.mxu0 0
    %235 = vmatpush1.bf16.msra.mxu0 %v214
    %236 = vmatprep.subr.bf16.mxu0 0
    %237 = vmatpush1.bf16.msra.mxu0 %v215
    %238 = vmatprep.subr.bf16.mxu0 0
    %239 = vmatpush1.bf16.msra.mxu0 %v216
    %240 = vmatprep.subr.bf16.mxu0 0
    %241 = vmatpush1.bf16.msra.mxu0 %v217
    %242 = vmatprep.subr.bf16.mxu0 0
    %243 = vmatpush1.bf16.msra.mxu0 0
    %244 = vmatprep.subr.bf16.mxu0 0
    %245 = vmatpush1.bf16.msra.mxu0 0
    %246 = vmatprep.subr.bf16.mxu0 0
    %247 = vmatpush1.bf16.msra.mxu0 0
    %248 = vmatprep.subr.bf16.mxu0 0
    %249 = vmatpush1.bf16.msra.mxu0 0
    %250 = vmatprep.subr.bf16.mxu0 0
    %251 = vmatpush1.bf16.msra.mxu0 0
    %252 = vmatprep.subr.bf16.mxu0 0
    %253 = vmatpush1.bf16.msra.mxu0 0
    %254 = vmatprep.subr.bf16.mxu0 0
    %255 = vmatpush1.bf16.msra.mxu0 0
    %256 = vmatprep.subr.bf16.mxu0 0
    %257 = vmatpush1.bf16.msra.mxu0 0
    %258 = vmatprep.mubr.bf16.mxu0 0
    %259 = vmatmul.mubr.bf16.gmra.mrb[0].mxu0 %v59
    %v260 = vpop.f32.mrb[0].mxu0
    %v261 = vadd.f32 0.0, %v260
    %v262 = vpop.f32.mrb[0].mxu0
    %v263 = vpop.f32.mrb[0].mxu0
    %v264 = vadd.f32 0.0, %v263
    %v265 = vpop.f32.mrb[0].mxu0
    %266 = vdwg.mxu0
    %v267 = vadd.f32 %v160, %v261
    %v268 = vadd.f32 %v161, %v264
    %vm269 = vcmask 64512
    %270 = vst.msk [vmem:[#allocation2] sm:$0xff] %vm269, %v267
    %271 = vst.msk [vmem:[#allocation2 + $0x8] sm:$0xff] %vm269, %v268
    // Predicated region
    $region30: #{with_adapter_packed.1} parent=1 // pred_check
      %p272 = pneg %p22
    $region31: #{with_adapter_packed.1} parent=1 // pred_check_branch
      %274 = sbr.rel (%p272) target = $region33
    $region32: #{with_adapter_packed.1} parent=1 // pred_region
      %v275 = vld [vmem:[#allocation3] sm:$0xff]
      %v276 = vld [vmem:[#allocation3 + $0x8] sm:$0xff]
      %v277 = vld [vmem:[#allocation2] sm:$0xff]
      %v278 = vld [vmem:[#allocation2 + $0x8] sm:$0xff]
      %v279 = vld [vmem:[%s4] sm:$0xff]
      %v281 = vsel %vm269, %v277, 0
      %v284 = vsel %vm269, %v278, 0
      %286 = vmatprep.subr.mxu0 0.0
      %287 = vmatpush1.msra.mxu0 %v279
      %288 = vmatprep.subr.mxu0 0.0
      %289 = vmatpush1.msra.mxu0 0.0
      %290 = vmatprep.subr.mxu0 0.0
      %291 = vmatpush1.msra.mxu0 0.0
      %292 = vmatprep.subr.mxu0 0.0
      %293 = vmatpush1.msra.mxu0 0.0
      %294 = vmatprep.subr.mxu0 0.0
      %295 = vmatpush1.msra.mxu0 0.0
      %296 = vmatprep.subr.mxu0 0.0
      %297 = vmatpush1.msra.mxu0 0.0
      %298 = vmatprep.subr.mxu0 0.0
      %299 = vmatpush1.msra.mxu0 0.0
      %300 = vmatprep.subr.mxu0 0.0
      %301 = vmatpush1.msra.mxu0 0.0
      %302 = vmatprep.subr.mxu0 0.0
      %303 = vmatpush1.msra.mxu0 0.0
      %304 = vmatprep.subr.mxu0 0.0
      %305 = vmatpush1.msra.mxu0 0.0
      %306 = vmatprep.subr.mxu0 0.0
      %307 = vmatpush1.msra.mxu0 0.0
      %308 = vmatprep.subr.mxu0 0.0
      %309 = vmatpush1.msra.mxu0 0.0
      %310 = vmatprep.subr.mxu0 0.0
      %311 = vmatpush1.msra.mxu0 0.0
      %312 = vmatprep.subr.mxu0 0.0
      %313 = vmatpush1.msra.mxu0 0.0
      %314 = vmatprep.subr.mxu0 0.0
      %315 = vmatpush1.msra.mxu0 0.0
      %316 = vmatprep.subr.mxu0 0.0
      %317 = vmatpush1.msra.mxu0 0.0
      %318 = vmatprep.subr.mxu0 0.0
      %319 = vmatpush1.msra.mxu0 0.0
      %320 = vmatprep.subr.mxu0 0.0
      %321 = vmatpush1.msra.mxu0 0.0
      %322 = vmatprep.subr.mxu0 0.0
      %323 = vmatpush1.msra.mxu0 0.0
      %324 = vmatprep.subr.mxu0 0.0
      %325 = vmatpush1.msra.mxu0 0.0
      %326 = vmatprep.subr.mxu0 0.0
      %327 = vmatpush1.msra.mxu0 0.0
      %328 = vmatprep.subr.mxu0 0.0
      %329 = vmatpush1.msra.mxu0 0.0
      %330 = vmatprep.subr.mxu0 0.0
      %331 = vmatpush1.msra.mxu0 0.0
      %332 = vmatprep.subr.mxu0 0.0
      %333 = vmatpush1.msra.mxu0 0.0
      %334 = vmatprep.subr.mxu0 0.0
      %335 = vmatpush1.msra.mxu0 0.0
      %336 = vmatprep.subr.mxu0 0.0
      %337 = vmatpush1.msra.mxu0 0.0
      %338 = vmatprep.subr.mxu0 0.0
      %339 = vmatpush1.msra.mxu0 0.0
      %340 = vmatprep.subr.mxu0 0.0
      %341 = vmatpush1.msra.mxu0 0.0
      %342 = vmatprep.subr.mxu0 0.0
      %343 = vmatpush1.msra.mxu0 0.0
      %344 = vmatprep.subr.mxu0 0.0
      %345 = vmatpush1.msra.mxu0 0.0
      %346 = vmatprep.subr.mxu0 0.0
      %347 = vmatpush1.msra.mxu0 0.0
      %348 = vmatprep.subr.mxu0 0.0
      %349 = vmatpush1.msra.mxu0 0.0
      %350 = vmatprep.mubr.f32.mxu0 0.0
      %351 = vmatmul.mubr.f32.gmra.mrb[0].mxu0 %v281
      %v352 = vpop.f32.mrb[0].mxu0
      %v353 = vadd.f32 0.0, %v352
      %v354 = vpop.f32.mrb[0].mxu0
      %355 = vmatprep.mubr.f32.mxu0 0.0
      %356 = vmatmul.mubr.f32.gmra.mrb[0].mxu0 %v284
      %v357 = vpop.f32.mrb[0].mxu0
      %v358 = vadd.f32 0.0, %v357
      %v359 = vpop.f32.mrb[0].mxu0
      %360 = vdwg.mxu0
      %v361 = vadd.f32 %v275, %v353
      %v362 = vadd.f32 %v276, %v358
      %363 = vst [vmem:[#allocation3] sm:$0xff] %v361
      %364 = vst [vmem:[#allocation3 + $0x8] sm:$0xff] %v362
    $region33: #{with_adapter_packed.1} parent=1 // pred_fallthru
      _
    // Predicated region
    $region34: #{with_adapter_packed.1} parent=1 // pred_check
      _
    $region35: #{with_adapter_packed.1} parent=1 // pred_check_branch
      %366 = sbr.rel (0) target = $region37
    $region36: #{with_adapter_packed.1} parent=1 // pred_region
      %s368 = ssub.s32 256, 256
      %369 = vsyncadd [#allocation4], %s368
      %s370 = sshll.u32 [#allocation3], 4
      %s371 = int_to_ptr.vmem [resolvable:$true] %s370
      %376 = dma.vmem_to_hbm [thread:$0]  %s371, 256, %s5, [#allocation4], 128, 128, 8
    $region37: #{with_adapter_packed.1} parent=1 // pred_fallthru
      _
    // Predicated region
    $region38: #{with_adapter_packed.1} parent=1 // pred_check
      _
    $region39: #{with_adapter_packed.1} parent=1 // pred_check_branch
      %378 = sbr.rel (0) target = $region41
    $region40: #{with_adapter_packed.1} parent=1 // pred_region
      %379 = dma.done [#allocation4], 256
    $region41: #{with_adapter_packed.1} parent=1 // pred_fallthru
      _
    %380 = vsyncpa [#allocation4], 1

</llo_original>
